<compile_context>
chip_gen: v7x
topology: tpu7x:2x2x1
jax: 0.10.0
libtpu: 0.0.40
codegen_flags: <defaults>
</compile_context>

<pallas_src>
import functools

import jax
import jax.numpy as jnp
from jax.experimental import pallas as pl
from jax.experimental.pallas import tpu as pltpu


def _round_up(v, m):
    return (v + m - 1) // m * m


# ----------------------------- fused Pallas kernel ---------------------------
def fused_gcn_kernel(*refs, num_layers):
    """refs = (adj, x, w0, b0, ..., w_{L-1}, b_{L-1}, out0, ..., out_{L-1})."""
    adj_ref, x_ref = refs[0], refs[1]
    wb_refs = refs[2:2 + 2 * num_layers]
    out_refs = refs[2 + 2 * num_layers:]

    # ---- GCN symmetric normalization, folded into the activations ----------
    # deg and d^{-1/2} are computed in f32 (VPU lane-reduce + EUP rsqrt); only
    # the raw adjacency is cast to bf16 for the MXU (exact for 0/1 weights).
    adj = adj_ref[...]                                           # (N, N) f32
    deg = jnp.sum(adj, axis=1, keepdims=True)                    # (N, 1) row sums
    d_inv_sqrt = jnp.where(deg > 0.0, jax.lax.rsqrt(deg), 0.0)   # (N, 1) f32
    adj_bf = adj.astype(jnp.bfloat16)

    h = x_ref[...]                                               # (N, Fp) bf16
    for i in range(num_layers):                                  # static unroll
        w = wb_refs[2 * i][...]                                  # (Fp_in, Fp_out) bf16
        b = wb_refs[2 * i + 1][...]                              # (1, Fp_out)    f32
        hs = (d_inv_sqrt * h).astype(jnp.bfloat16)               # D^{-1/2} h   (f32 scale)
        xw = jnp.dot(hs, w, preferred_element_type=jnp.float32)          # MXU
        agg = jnp.dot(adj_bf, xw.astype(jnp.bfloat16),
                      preferred_element_type=jnp.float32)                # MXU
        act = jnp.maximum(d_inv_sqrt * agg + b, 0.0)             # f32 bias + ReLU epilogue
        out_refs[i][...] = act                                   # lane-dense (128-wide) store
        h = act                                                  # feeds next layer


# ----------------------------- wrapper ---------------------------------------
def gcn_mgae_forward(x, adj, params):
    """Mirrors GCN_mgae.forward: returns the list xx of per-layer ReLU'd outputs.

    # TODO(synk): dropout is only active in training mode; eval-mode forward
    # (dropout == identity) is what is implemented here.
    """
    n, fin = x.shape
    num_layers = len(params)

    n_pad = _round_up(n, 8)              # sublane alignment
    fin_pad = _round_up(fin, 128)        # lane-dense feature width

    adj_pad = jnp.zeros((n_pad, n_pad), jnp.float32).at[:n, :n].set(adj)
    x_pad = jnp.zeros((n_pad, fin_pad), jnp.float32).at[:n, :fin].set(x)
    x_pad = x_pad.astype(jnp.bfloat16)

    flat_inputs = [adj_pad, x_pad]
    out_shapes = []
    fouts = []
    for (w, b) in params:
        fi, fo = w.shape
        fi_pad, fo_pad = _round_up(fi, 128), _round_up(fo, 128)
        w_pad = jnp.zeros((fi_pad, fo_pad), jnp.float32).at[:fi, :fo].set(w)
        b_pad = jnp.zeros((1, fo_pad), jnp.float32).at[0, :fo].set(b)
        flat_inputs += [w_pad.astype(jnp.bfloat16), b_pad]
        out_shapes.append(jax.ShapeDtypeStruct((n_pad, fo_pad), jnp.float32))
        fouts.append(fo)

    vmem = pl.BlockSpec(memory_space=pltpu.MemorySpace.VMEM)
    kernel = functools.partial(fused_gcn_kernel, num_layers=num_layers)
    outs = pl.pallas_call(
        kernel,
        out_shape=tuple(out_shapes),
        in_specs=[vmem] * len(flat_inputs),
        out_specs=tuple(vmem for _ in out_shapes),
    )(*flat_inputs)

    # strip the lane / sublane padding
    return [o[:n, :fo] for o, fo in zip(outs, fouts)]


# ----------------------------- pure-JAX reference ----------------------------
def gcn_mgae_reference(x, adj, params):
    deg = jnp.sum(adj, axis=1)
    d = jnp.where(deg > 0, 1.0 / jnp.sqrt(deg), 0.0)
    adj_norm = adj * d[:, None] * d[None, :]
    xx = []
    h = x
    for (w, b) in params:
        h = jnp.maximum(adj_norm @ (h @ w) + b, 0.0)
        xx.append(h)
    return xx


# ----------------------------- params ----------------------------------------
def init_params(key, in_channels, hidden_channels, out_channels, num_layers):
    """Deterministic synthetic weights (Glorot-ish scale), one (W, b) per GCNConv."""
    dims = [in_channels] + [hidden_channels] * (num_layers - 1) + [out_channels]
    params = []
    for i in range(num_layers):
        key, kw = jax.random.split(key)
        fi, fo = dims[i], dims[i + 1]
        scale = jnp.sqrt(2.0 / (fi + fo))
        w = scale * jax.random.normal(kw, (fi, fo), dtype=jnp.float32)
        b = jnp.zeros((fo,), dtype=jnp.float32)
        params.append((w, b))
    return params


# --------------------------------- main ---------------------------------------
if __name__ == "__main__":
    key = jax.random.PRNGKey(0)

    num_nodes = 64
    in_channels = 16
    hidden_channels = 32
    out_channels = 32
    num_layers = 3

    k_x, k_adj, k_p = jax.random.split(key, 3)

    # node features
    x = jax.random.normal(k_x, (num_nodes, in_channels), dtype=jnp.float32)

    # random symmetric binary adjacency (no self loops)
    a = (jax.random.uniform(k_adj, (num_nodes, num_nodes)) < 0.1).astype(jnp.float32)
    adj = jnp.maximum(a, a.T)
    adj = adj * (1.0 - jnp.eye(num_nodes, dtype=jnp.float32))

    params = init_params(k_p, in_channels, hidden_channels, out_channels, num_layers)

    outputs = gcn_mgae_forward(x, adj, params)
    outputs = [jax.block_until_ready(o) for o in outputs]

    # shape sanity
    assert outputs[0].shape == (num_nodes, hidden_channels)
    assert outputs[1].shape == (num_nodes, hidden_channels)
    assert outputs[2].shape == (num_nodes, out_channels)

    # numerical sanity vs. f32 reference (kernel uses bf16 MXU inputs, f32 accum)
    refs = gcn_mgae_reference(x, adj, params)
    for o, r in zip(outputs, refs):
        assert bool(jnp.all(jnp.isfinite(o)))
        err = float(jnp.max(jnp.abs(o - r)))
        assert err < 0.25, f"max abs err too large: {err}"

    print("KERNEL_OK")
</pallas_src>

<mosaic_0001>
module attributes {stable_mosaic.version = 11 : i64} {
  func.func @fused_gcn_kernel(%arg0: memref<64x64xf32, #tpu.memory_space<vmem>>, %arg1: memref<64x128xbf16, #tpu.memory_space<vmem>>, %arg2: memref<128x128xbf16, #tpu.memory_space<vmem>>, %arg3: memref<1x128xf32, #tpu.memory_space<vmem>>, %arg4: memref<128x128xbf16, #tpu.memory_space<vmem>>, %arg5: memref<1x128xf32, #tpu.memory_space<vmem>>, %arg6: memref<128x128xbf16, #tpu.memory_space<vmem>>, %arg7: memref<1x128xf32, #tpu.memory_space<vmem>>, %arg8: memref<64x128xf32, #tpu.memory_space<vmem>>, %arg9: memref<64x128xf32, #tpu.memory_space<vmem>>, %arg10: memref<64x128xf32, #tpu.memory_space<vmem>>) attributes {dimension_semantics = [], scalar_prefetch = 0 : i64, scratch_operands = 0 : i64, tpu.core_type = #tpu.core_type<tc>} {
    %c0 = arith.constant 0 : index
    %c0_0 = arith.constant 0 : index
    %0 = vector.load %arg0[%c0, %c0_0] : memref<64x64xf32, #tpu.memory_space<vmem>>, vector<64x64xf32>
    %cst = arith.constant dense<0.000000e+00> : vector<64xf32>
    %1 = vector.multi_reduction <add>, %0, %cst [1] : vector<64x64xf32> to vector<64xf32>
    %2 = vector.shape_cast %1 : vector<64xf32> to vector<64x1xf32>
    %cst_1 = arith.constant 0.000000e+00 : f32
    %3 = vector.broadcast %cst_1 : f32 to vector<64x1xf32>
    %4 = arith.cmpf ogt, %2, %3 : vector<64x1xf32>
    %5 = math.rsqrt %2 : vector<64x1xf32>
    %cst_2 = arith.constant 0.000000e+00 : f32
    %6 = vector.broadcast %cst_2 : f32 to vector<64x1xf32>
    %7 = arith.select %4, %5, %6 : vector<64x1xi1>, vector<64x1xf32>
    %8 = arith.truncf %0 : vector<64x64xf32> to vector<64x64xbf16>
    %c0_3 = arith.constant 0 : index
    %c0_4 = arith.constant 0 : index
    %9 = vector.load %arg1[%c0_3, %c0_4] : memref<64x128xbf16, #tpu.memory_space<vmem>>, vector<64x128xbf16>
    %c0_5 = arith.constant 0 : index
    %c0_6 = arith.constant 0 : index
    %10 = vector.load %arg2[%c0_5, %c0_6] : memref<128x128xbf16, #tpu.memory_space<vmem>>, vector<128x128xbf16>
    %c0_7 = arith.constant 0 : index
    %c0_8 = arith.constant 0 : index
    %11 = vector.load %arg3[%c0_7, %c0_8] : memref<1x128xf32, #tpu.memory_space<vmem>>, vector<1x128xf32>
    %12 = arith.extf %9 : vector<64x128xbf16> to vector<64x128xf32>
    %13 = vector.broadcast %7 : vector<64x1xf32> to vector<64x128xf32>
    %14 = arith.mulf %13, %12 : vector<64x128xf32>
    %15 = arith.truncf %14 : vector<64x128xf32> to vector<64x128xbf16>
    %cst_9 = arith.constant dense<0.000000e+00> : vector<64x128xf32>
    %16 = tpu.matmul %15, %10, %cst_9 {dimension_numbers = #tpu.dot_dimension_numbers<[1], [0], [0], [1], [0, 0, 1, 1], [], []>} : vector<64x128xbf16>, vector<128x128xbf16>, vector<64x128xf32> -> vector<64x128xf32>
    %17 = arith.truncf %16 : vector<64x128xf32> to vector<64x128xbf16>
    %cst_10 = arith.constant dense<0.000000e+00> : vector<64x128xf32>
    %18 = tpu.matmul %8, %17, %cst_10 {dimension_numbers = #tpu.dot_dimension_numbers<[1], [0], [0], [1], [0, 0, 1, 1], [], []>} : vector<64x64xbf16>, vector<64x128xbf16>, vector<64x128xf32> -> vector<64x128xf32>
    %19 = vector.broadcast %7 : vector<64x1xf32> to vector<64x128xf32>
    %20 = arith.mulf %19, %18 : vector<64x128xf32>
    %21 = vector.broadcast %11 : vector<1x128xf32> to vector<64x128xf32>
    %22 = arith.addf %20, %21 : vector<64x128xf32>
    %cst_11 = arith.constant 0.000000e+00 : f32
    %23 = vector.broadcast %cst_11 : f32 to vector<64x128xf32>
    %24 = arith.maximumf %22, %23 : vector<64x128xf32>
    %c0_12 = arith.constant 0 : index
    %c0_13 = arith.constant 0 : index
    %25 = vector.load %arg8[%c0_12, %c0_13] : memref<64x128xf32, #tpu.memory_space<vmem>>, vector<64x128xf32>
    tpu.vector_store %arg8[%c0_12, %c0_13], %24 {strides = array<i32>} : memref<64x128xf32, #tpu.memory_space<vmem>>, vector<64x128xf32>,
    %c0_14 = arith.constant 0 : index
    %c0_15 = arith.constant 0 : index
    %26 = vector.load %arg4[%c0_14, %c0_15] : memref<128x128xbf16, #tpu.memory_space<vmem>>, vector<128x128xbf16>
    %c0_16 = arith.constant 0 : index
    %c0_17 = arith.constant 0 : index
    %27 = vector.load %arg5[%c0_16, %c0_17] : memref<1x128xf32, #tpu.memory_space<vmem>>, vector<1x128xf32>
    %28 = vector.broadcast %7 : vector<64x1xf32> to vector<64x128xf32>
    %29 = arith.mulf %28, %24 : vector<64x128xf32>
    %30 = arith.truncf %29 : vector<64x128xf32> to vector<64x128xbf16>
    %cst_18 = arith.constant dense<0.000000e+00> : vector<64x128xf32>
    %31 = tpu.matmul %30, %26, %cst_18 {dimension_numbers = #tpu.dot_dimension_numbers<[1], [0], [0], [1], [0, 0, 1, 1], [], []>} : vector<64x128xbf16>, vector<128x128xbf16>, vector<64x128xf32> -> vector<64x128xf32>
    %32 = arith.truncf %31 : vector<64x128xf32> to vector<64x128xbf16>
    %cst_19 = arith.constant dense<0.000000e+00> : vector<64x128xf32>
    %33 = tpu.matmul %8, %32, %cst_19 {dimension_numbers = #tpu.dot_dimension_numbers<[1], [0], [0], [1], [0, 0, 1, 1], [], []>} : vector<64x64xbf16>, vector<64x128xbf16>, vector<64x128xf32> -> vector<64x128xf32>
    %34 = vector.broadcast %7 : vector<64x1xf32> to vector<64x128xf32>
    %35 = arith.mulf %34, %33 : vector<64x128xf32>
    %36 = vector.broadcast %27 : vector<1x128xf32> to vector<64x128xf32>
    %37 = arith.addf %35, %36 : vector<64x128xf32>
    %cst_20 = arith.constant 0.000000e+00 : f32
    %38 = vector.broadcast %cst_20 : f32 to vector<64x128xf32>
    %39 = arith.maximumf %37, %38 : vector<64x128xf32>
    %c0_21 = arith.constant 0 : index
    %c0_22 = arith.constant 0 : index
    %40 = vector.load %arg9[%c0_21, %c0_22] : memref<64x128xf32, #tpu.memory_space<vmem>>, vector<64x128xf32>
    tpu.vector_store %arg9[%c0_21, %c0_22], %39 {strides = array<i32>} : memref<64x128xf32, #tpu.memory_space<vmem>>, vector<64x128xf32>,
    %c0_23 = arith.constant 0 : index
    %c0_24 = arith.constant 0 : index
    %41 = vector.load %arg6[%c0_23, %c0_24] : memref<128x128xbf16, #tpu.memory_space<vmem>>, vector<128x128xbf16>
    %c0_25 = arith.constant 0 : index
    %c0_26 = arith.constant 0 : index
    %42 = vector.load %arg7[%c0_25, %c0_26] : memref<1x128xf32, #tpu.memory_space<vmem>>, vector<1x128xf32>
    %43 = vector.broadcast %7 : vector<64x1xf32> to vector<64x128xf32>
    %44 = arith.mulf %43, %39 : vector<64x128xf32>
    %45 = arith.truncf %44 : vector<64x128xf32> to vector<64x128xbf16>
    %cst_27 = arith.constant dense<0.000000e+00> : vector<64x128xf32>
    %46 = tpu.matmul %45, %41, %cst_27 {dimension_numbers = #tpu.dot_dimension_numbers<[1], [0], [0], [1], [0, 0, 1, 1], [], []>} : vector<64x128xbf16>, vector<128x128xbf16>, vector<64x128xf32> -> vector<64x128xf32>
    %47 = arith.truncf %46 : vector<64x128xf32> to vector<64x128xbf16>
    %cst_28 = arith.constant dense<0.000000e+00> : vector<64x128xf32>
    %48 = tpu.matmul %8, %47, %cst_28 {dimension_numbers = #tpu.dot_dimension_numbers<[1], [0], [0], [1], [0, 0, 1, 1], [], []>} : vector<64x64xbf16>, vector<64x128xbf16>, vector<64x128xf32> -> vector<64x128xf32>
    %49 = vector.broadcast %7 : vector<64x1xf32> to vector<64x128xf32>
    %50 = arith.mulf %49, %48 : vector<64x128xf32>
    %51 = vector.broadcast %42 : vector<1x128xf32> to vector<64x128xf32>
    %52 = arith.addf %50, %51 : vector<64x128xf32>
    %cst_29 = arith.constant 0.000000e+00 : f32
    %53 = vector.broadcast %cst_29 : f32 to vector<64x128xf32>
    %54 = arith.maximumf %52, %53 : vector<64x128xf32>
    %c0_30 = arith.constant 0 : index
    %c0_31 = arith.constant 0 : index
    %55 = vector.load %arg10[%c0_30, %c0_31] : memref<64x128xf32, #tpu.memory_space<vmem>>, vector<64x128xf32>
    tpu.vector_store %arg10[%c0_30, %c0_31], %54 {strides = array<i32>} : memref<64x128xf32, #tpu.memory_space<vmem>>, vector<64x128xf32>,
    return
  }
}

</mosaic_0001>

<llo_original>
// kernel: tpu_custom_call.1
$region0: #{tpu_custom_call.1}
  #allocation0 [shape = 'u32[]', space=smem, size = 0x4, offset = 0x4, fixed_abs, tag = 'smem constant byte address 0x4 - core index']
  #allocation1 [shape = 'u32[144,128]{1,0:T(1,128)}', space=vmem, size = 0x12000, scoped, tag = 'internal scratch']
  %s0 = inlined_call_operand.hbm [shape: f32[64,64], index: 0, kind: input, shape index: {}]
  %s1 = inlined_call_operand.hbm [shape: bf16[64,128], index: 1, kind: input, shape index: {}]
  %s2 = inlined_call_operand.hbm [shape: bf16[128,128], index: 2, kind: input, shape index: {}]
  %s3 = inlined_call_operand.vmem [shape: f32[1,128], index: 3, kind: input, shape index: {}]
  %s4 = inlined_call_operand.hbm [shape: bf16[128,128], index: 4, kind: input, shape index: {}]
  %s5 = inlined_call_operand.vmem [shape: f32[1,128], index: 5, kind: input, shape index: {}]
  %s6 = inlined_call_operand.hbm [shape: bf16[128,128], index: 6, kind: input, shape index: {}]
  %s7 = inlined_call_operand.vmem [shape: f32[1,128], index: 7, kind: input, shape index: {}]
  %s8 = inlined_call_operand.hbm [shape: f32[64,128], index: 8, kind: output, shape index: {0}]
  %s9 = inlined_call_operand.hbm [shape: f32[64,128], index: 9, kind: output, shape index: {1}]
  %s10 = inlined_call_operand.hbm [shape: f32[64,128], index: 10, kind: output, shape index: {2}]
  %11 = xla_tuple %s8, %s9, %s10
  %s12 = sld [smem:[#allocation0]]
  $region78: #{tpu_custom_call.1} parent=0
    _
  %s14 = ssub.s32 1, %s12
  %s15 = scalar_select 0, %s14, %s12
  $region1: #{tpu_custom_call.1} parent=0
    #allocation2 [shape = 'u8[32768]{0}', space=vmem, size = 0x8000, scoped, tag = 'input window, operand 0, single buffered']
    #allocation3 [shape = 's32[1]{0}', space=sflag, size = 0x4, scoped, tag = 'scoped memory for tpu_custom_call.1']
    #allocation4 [shape = 's32[1]{0}', space=sflag, size = 0x4, scoped, tag = 'scoped memory for tpu_custom_call.1']
    #allocation5 [shape = 'u8[16384]{0}', space=vmem, size = 0x4000, scoped, tag = 'input window, operand 1, single buffered']
    #allocation6 [shape = 's32[1]{0}', space=sflag, size = 0x4, scoped, tag = 'scoped memory for tpu_custom_call.1']
    #allocation7 [shape = 'u8[32768]{0}', space=vmem, size = 0x8000, scoped, tag = 'input window, operand 2, single buffered']
    #allocation8 [shape = 'u8[32768]{0}', space=vmem, size = 0x8000, scoped, tag = 'input window, operand 4, single buffered']
    #allocation9 [shape = 's32[1]{0}', space=sflag, size = 0x4, scoped, tag = 'scoped memory for tpu_custom_call.1']
    #allocation10 [shape = 'u8[32768]{0}', space=vmem, size = 0x8000, scoped, tag = 'input window, operand 6, single buffered']
    #allocation11 [shape = 'u8[32768]{0}', space=vmem, size = 0x8000, scoped, tag = 'output window, operand 0, single buffered']
    #allocation12 [shape = 'u8[32768]{0}', space=vmem, size = 0x8000, scoped, tag = 'output window, operand 1, single buffered']
    #allocation13 [shape = 's32[1]{0}', space=sflag, size = 0x4, scoped, tag = 'scoped memory for tpu_custom_call.1']
    #allocation14 [shape = 'u8[32768]{0}', space=vmem, size = 0x8000, scoped, tag = 'output window, operand 2, single buffered']
    %16 = vsyncpa [#allocation3], 0
    %17 = vsyncpa [#allocation6], 0
    %18 = vsyncpa [#allocation9], 0
    %19 = vsyncpa [#allocation4], 0
    %20 = vsyncpa [#allocation13], 0
    // Predicated region
    $region2: #{tpu_custom_call.1} parent=1 // pred_check
      _
    $region3: #{tpu_custom_call.1} parent=1 // pred_check_branch
      %22 = sbr.rel (0) target = $region5
    $region4: #{tpu_custom_call.1} parent=1 // pred_region
      %s24 = ssub.s32 1024, 1024
      %25 = vsyncadd [#allocation3], %s24
      %s26 = sshll.u32 [#allocation2], 4
      %s27 = int_to_ptr.vmem [resolvable:$true] %s26
      %32 = dma.hbm_to_vmem [thread:$0]  %s0, 1024, %s27, [#allocation3], 128, 128, 8
    $region5: #{tpu_custom_call.1} parent=1 // pred_fallthru
      _
    // Predicated region
    $region6: #{tpu_custom_call.1} parent=1 // pred_check
      _
    $region7: #{tpu_custom_call.1} parent=1 // pred_check_branch
      %34 = sbr.rel (0) target = $region9
    $region8: #{tpu_custom_call.1} parent=1 // pred_region
      %s36 = ssub.s32 512, 512
      %37 = vsyncadd [#allocation6], %s36
      %s38 = sshll.u32 [#allocation5], 4
      %s39 = int_to_ptr.vmem [resolvable:$true] %s38
      %44 = dma.hbm_to_vmem [thread:$0]  %s1, 512, %s39, [#allocation6], 64, 64, 4
    $region9: #{tpu_custom_call.1} parent=1 // pred_fallthru
      _
    // Predicated region
    $region10: #{tpu_custom_call.1} parent=1 // pred_check
      _
    $region11: #{tpu_custom_call.1} parent=1 // pred_check_branch
      %46 = sbr.rel (0) target = $region13
    $region12: #{tpu_custom_call.1} parent=1 // pred_region
      %s48 = ssub.s32 1024, 1024
      %49 = vsyncadd [#allocation6], %s48
      %s50 = sshll.u32 [#allocation7], 4
      %s51 = int_to_ptr.vmem [resolvable:$true] %s50
      %56 = dma.hbm_to_vmem [thread:$0]  %s2, 1024, %s51, [#allocation6], 64, 64, 4
    $region13: #{tpu_custom_call.1} parent=1 // pred_fallthru
      _
    // Predicated region
    $region14: #{tpu_custom_call.1} parent=1 // pred_check
      _
    $region15: #{tpu_custom_call.1} parent=1 // pred_check_branch
      %58 = sbr.rel (0) target = $region17
    $region16: #{tpu_custom_call.1} parent=1 // pred_region
      _
    $region17: #{tpu_custom_call.1} parent=1 // pred_fallthru
      _
    // Predicated region
    $region18: #{tpu_custom_call.1} parent=1 // pred_check
      _
    $region19: #{tpu_custom_call.1} parent=1 // pred_check_branch
      %60 = sbr.rel (0) target = $region21
    $region20: #{tpu_custom_call.1} parent=1 // pred_region
      %s62 = ssub.s32 1024, 1024
      %63 = vsyncadd [#allocation9], %s62
      %s64 = sshll.u32 [#allocation8], 4
      %s65 = int_to_ptr.vmem [resolvable:$true] %s64
      %70 = dma.hbm_to_vmem [thread:$0]  %s4, 1024, %s65, [#allocation9], 64, 64, 4
    $region21: #{tpu_custom_call.1} parent=1 // pred_fallthru
      _
    // Predicated region
    $region22: #{tpu_custom_call.1} parent=1 // pred_check
      _
    $region23: #{tpu_custom_call.1} parent=1 // pred_check_branch
      %72 = sbr.rel (0) target = $region25
    $region24: #{tpu_custom_call.1} parent=1 // pred_region
      _
    $region25: #{tpu_custom_call.1} parent=1 // pred_fallthru
      _
    // Predicated region
    $region26: #{tpu_custom_call.1} parent=1 // pred_check
      _
    $region27: #{tpu_custom_call.1} parent=1 // pred_check_branch
      %74 = sbr.rel (0) target = $region29
    $region28: #{tpu_custom_call.1} parent=1 // pred_region
      %s76 = ssub.s32 1024, 1024
      %77 = vsyncadd [#allocation9], %s76
      %s78 = sshll.u32 [#allocation10], 4
      %s79 = int_to_ptr.vmem [resolvable:$true] %s78
      %84 = dma.hbm_to_vmem [thread:$0]  %s6, 1024, %s79, [#allocation9], 64, 64, 4
    $region29: #{tpu_custom_call.1} parent=1 // pred_fallthru
      _
    // Predicated region
    $region30: #{tpu_custom_call.1} parent=1 // pred_check
      _
    $region31: #{tpu_custom_call.1} parent=1 // pred_check_branch
      %86 = sbr.rel (0) target = $region33
    $region32: #{tpu_custom_call.1} parent=1 // pred_region
      _
    $region33: #{tpu_custom_call.1} parent=1 // pred_fallthru
      _
    // Predicated region
    $region34: #{tpu_custom_call.1} parent=1 // pred_check
      _
    $region35: #{tpu_custom_call.1} parent=1 // pred_check_branch
      %88 = sbr.rel (0) target = $region37
    $region36: #{tpu_custom_call.1} parent=1 // pred_region
      %89 = dma.done [#allocation3], 1024
    $region37: #{tpu_custom_call.1} parent=1 // pred_fallthru
      _
    // Predicated region
    $region38: #{tpu_custom_call.1} parent=1 // pred_check
      _
    $region39: #{tpu_custom_call.1} parent=1 // pred_check_branch
      %91 = sbr.rel (0) target = $region41
    $region40: #{tpu_custom_call.1} parent=1 // pred_region
      %92 = dma.done [#allocation6], 512
    $region41: #{tpu_custom_call.1} parent=1 // pred_fallthru
      _
    // Predicated region
    $region42: #{tpu_custom_call.1} parent=1 // pred_check
      _
    $region43: #{tpu_custom_call.1} parent=1 // pred_check_branch
      %94 = sbr.rel (0) target = $region45
    $region44: #{tpu_custom_call.1} parent=1 // pred_region
      %95 = dma.done [#allocation6], 1024
    $region45: #{tpu_custom_call.1} parent=1 // pred_fallthru
      _
    // Predicated region
    $region46: #{tpu_custom_call.1} parent=1 // pred_check
      _
    $region47: #{tpu_custom_call.1} parent=1 // pred_check_branch
      %97 = sbr.rel (0) target = $region49
    $region48: #{tpu_custom_call.1} parent=1 // pred_region
      %98 = dma.done [#allocation9], 1024
    $region49: #{tpu_custom_call.1} parent=1 // pred_fallthru
      _
    // Predicated region
    $region50: #{tpu_custom_call.1} parent=1 // pred_check
      _
    $region51: #{tpu_custom_call.1} parent=1 // pred_check_branch
      %100 = sbr.rel (0) target = $region53
    $region52: #{tpu_custom_call.1} parent=1 // pred_region
      %101 = dma.done [#allocation9], 1024
    $region53: #{tpu_custom_call.1} parent=1 // pred_fallthru
      _
    %v103 = vld [vmem:[#allocation2] sm:$0xff]
    %v104 = vld [vmem:[#allocation2 + $0x8] sm:$0xff]
    %v105 = vld [vmem:[#allocation2 + $0x10] sm:$0xff]
    %v106 = vld [vmem:[#allocation2 + $0x18] sm:$0xff]
    %v107 = vld [vmem:[#allocation2 + $0x20] sm:$0xff]
    %v108 = vld [vmem:[#allocation2 + $0x28] sm:$0xff]
    %v109 = vld [vmem:[#allocation2 + $0x30] sm:$0xff]
    %v110 = vld [vmem:[#allocation2 + $0x38] sm:$0xff]
    %vm111 = vcmask 523264
    %v112 = vsel %vm111, %v103, 0.0
    %113 = vadd.xlane.f32.xlu0 %v112
    %v114 = vpop.xlane.xlu0 %113
    %v115 = vsel %vm111, %v104, 0.0
    %116 = vadd.xlane.f32.xlu0 %v115
    %v117 = vpop.xlane.xlu0 %116
    %v118 = vsel %vm111, %v105, 0.0
    %119 = vadd.xlane.f32.xlu0 %v118
    %v120 = vpop.xlane.xlu0 %119
    %v121 = vsel %vm111, %v106, 0.0
    %122 = vadd.xlane.f32.xlu0 %v121
    %v123 = vpop.xlane.xlu0 %122
    %v124 = vsel %vm111, %v107, 0.0
    %125 = vadd.xlane.f32.xlu0 %v124
    %v126 = vpop.xlane.xlu0 %125
    %v127 = vsel %vm111, %v108, 0.0
    %128 = vadd.xlane.f32.xlu0 %v127
    %v129 = vpop.xlane.xlu0 %128
    %v130 = vsel %vm111, %v109, 0.0
    %131 = vadd.xlane.f32.xlu0 %v130
    %v132 = vpop.xlane.xlu0 %131
    %v133 = vsel %vm111, %v110, 0.0
    %134 = vadd.xlane.f32.xlu0 %v133
    %v135 = vpop.xlane.xlu0 %134
    %vm136 = vcmp.gt.f32.partialorder %v114, 0.0
    %vm137 = vcmp.gt.f32.partialorder %v117, 0.0
    %vm138 = vcmp.gt.f32.partialorder %v120, 0.0
    %vm139 = vcmp.gt.f32.partialorder %v123, 0.0
    %vm140 = vcmp.gt.f32.partialorder %v126, 0.0
    %vm141 = vcmp.gt.f32.partialorder %v129, 0.0
    %vm142 = vcmp.gt.f32.partialorder %v132, 0.0
    %vm143 = vcmp.gt.f32.partialorder %v135, 0.0
    %v144 = vrsqrt.pop %v114
    %v145 = vrsqrt.pop %v117
    %v146 = vrsqrt.pop %v120
    %v147 = vrsqrt.pop %v123
    %v148 = vrsqrt.pop %v126
    %v149 = vrsqrt.pop %v129
    %v150 = vrsqrt.pop %v132
    %v151 = vrsqrt.pop %v135
    %v152 = vsel %vm136, %v144, 0.0
    %v153 = vsel %vm137, %v145, 0.0
    %v154 = vsel %vm138, %v146, 0.0
    %v155 = vsel %vm139, %v147, 0.0
    %v156 = vsel %vm140, %v148, 0.0
    %v157 = vsel %vm141, %v149, 0.0
    %v158 = vsel %vm142, %v150, 0.0
    %v159 = vsel %vm143, %v151, 0.0
    %v160 = vpack.c.bf16 %v104, %v103
    %v161 = vpack.c.bf16 %v106, %v105
    %v162 = vpack.c.bf16 %v108, %v107
    %v163 = vpack.c.bf16 %v110, %v109
    %v164 = vld [vmem:[#allocation5] sm:$0xf]
    %v165 = vld [vmem:[#allocation5 + $0x4] sm:$0xf]
    %v166 = vld [vmem:[#allocation5 + $0x8] sm:$0xf]
    %v167 = vld [vmem:[#allocation5 + $0xc] sm:$0xf]
    %v168 = vld [vmem:[#allocation5 + $0x10] sm:$0xf]
    %v169 = vld [vmem:[#allocation5 + $0x14] sm:$0xf]
    %v170 = vld [vmem:[#allocation5 + $0x18] sm:$0xf]
    %v171 = vld [vmem:[#allocation5 + $0x1c] sm:$0xf]
    %v172 = vld [vmem:[#allocation7] sm:$0xf]
    %v173 = vld [vmem:[#allocation7 + $0x4] sm:$0xf]
    %v174 = vld [vmem:[#allocation7 + $0x8] sm:$0xf]
    %v175 = vld [vmem:[#allocation7 + $0xc] sm:$0xf]
    %v176 = vld [vmem:[#allocation7 + $0x10] sm:$0xf]
    %v177 = vld [vmem:[#allocation7 + $0x14] sm:$0xf]
    %v178 = vld [vmem:[#allocation7 + $0x18] sm:$0xf]
    %v179 = vld [vmem:[#allocation7 + $0x1c] sm:$0xf]
    %v180 = vld [vmem:[#allocation7 + $0x20] sm:$0xf]
    %v181 = vld [vmem:[#allocation7 + $0x24] sm:$0xf]
    %v182 = vld [vmem:[#allocation7 + $0x28] sm:$0xf]
    %v183 = vld [vmem:[#allocation7 + $0x2c] sm:$0xf]
    %v184 = vld [vmem:[#allocation7 + $0x30] sm:$0xf]
    %v185 = vld [vmem:[#allocation7 + $0x34] sm:$0xf]
    %v186 = vld [vmem:[#allocation7 + $0x38] sm:$0xf]
    %v187 = vld [vmem:[#allocation7 + $0x3c] sm:$0xf]
    %v188 = vld [vmem:[%s3] sm:$0x1]
    %v189 = vunpack.c.l.bf16 %v164
    %v190 = vunpack.c.l.bf16 %v165
    %v191 = vunpack.c.l.bf16 %v166
    %v192 = vunpack.c.l.bf16 %v167
    %v193 = vunpack.c.l.bf16 %v168
    %v194 = vunpack.c.l.bf16 %v169
    %v195 = vunpack.c.l.bf16 %v170
    %v196 = vunpack.c.l.bf16 %v171
    %v197 = vmul.f32 %v152, %v189
    %v198 = vmul.f32 %v153, %v190
    %v199 = vmul.f32 %v154, %v191
    %v200 = vmul.f32 %v155, %v192
    %v201 = vmul.f32 %v156, %v193
    %v202 = vmul.f32 %v157, %v194
    %v203 = vmul.f32 %v158, %v195
    %v204 = vmul.f32 %v159, %v196
    %v205 = vpack.c.bf16 %v198, %v197
    %v206 = vpack.c.bf16 %v200, %v199
    %v207 = vpack.c.bf16 %v202, %v201
    %v208 = vpack.c.bf16 %v204, %v203
    %v225 = vunpack.c.l.b16 %v172
    %v226 = vunpack.c.l.b16 %v173
    %v227 = vunpack.c.l.b16 %v174
    %v228 = vunpack.c.l.b16 %v175
    %v229 = vunpack.c.l.b16 %v176
    %v230 = vunpack.c.l.b16 %v177
    %v231 = vunpack.c.l.b16 %v178
    %v232 = vunpack.c.l.b16 %v179
    %v233 = vunpack.c.l.b16 %v180
    %v234 = vunpack.c.l.b16 %v181
    %v235 = vunpack.c.l.b16 %v182
    %v236 = vunpack.c.l.b16 %v183
    %v237 = vunpack.c.l.b16 %v184
    %v238 = vunpack.c.l.b16 %v185
    %v239 = vunpack.c.l.b16 %v186
    %v240 = vunpack.c.l.b16 %v187
    %v241 = vpack.c.b16 %v226, %v225
    %v242 = vpack.c.b16 %v228, %v227
    %v243 = vpack.c.b16 %v230, %v229
    %v244 = vpack.c.b16 %v232, %v231
    %v245 = vpack.c.b16 %v234, %v233
    %v246 = vpack.c.b16 %v236, %v235
    %v247 = vpack.c.b16 %v238, %v237
    %v248 = vpack.c.b16 %v240, %v239
    %257 = vmatprep.subr.bf16.mxu0 0
    %258 = vmatpush1.bf16.msra.mxu0 %v241
    %259 = vmatprep.subr.bf16.mxu0 0
    %260 = vmatpush1.bf16.msra.mxu0 %v242
    %261 = vmatprep.subr.bf16.mxu0 0
    %262 = vmatpush1.bf16.msra.mxu0 %v243
    %263 = vmatprep.subr.bf16.mxu0 0
    %264 = vmatpush1.bf16.msra.mxu0 %v244
    %265 = vmatprep.subr.bf16.mxu0 0
    %266 = vmatpush1.bf16.msra.mxu0 %v245
    %267 = vmatprep.subr.bf16.mxu0 0
    %268 = vmatpush1.bf16.msra.mxu0 %v246
    %269 = vmatprep.subr.bf16.mxu0 0
    %270 = vmatpush1.bf16.msra.mxu0 %v247
    %271 = vmatprep.subr.bf16.mxu0 0
    %272 = vmatpush1.bf16.msra.mxu0 %v248
    %273 = vmatprep.subr.bf16.mxu0 0
    %274 = vmatpush1.bf16.msra.mxu0 0
    %275 = vmatprep.subr.bf16.mxu0 0
    %276 = vmatpush1.bf16.msra.mxu0 0
    %277 = vmatprep.subr.bf16.mxu0 0
    %278 = vmatpush1.bf16.msra.mxu0 0
    %279 = vmatprep.subr.bf16.mxu0 0
    %280 = vmatpush1.bf16.msra.mxu0 0
    %281 = vmatprep.subr.bf16.mxu0 0
    %282 = vmatpush1.bf16.msra.mxu0 0
    %283 = vmatprep.subr.bf16.mxu0 0
    %284 = vmatpush1.bf16.msra.mxu0 0
    %285 = vmatprep.subr.bf16.mxu0 0
    %286 = vmatpush1.bf16.msra.mxu0 0
    %287 = vmatprep.subr.bf16.mxu0 0
    %288 = vmatpush1.bf16.msra.mxu0 0
    %289 = vmatprep.mubr.bf16.mxu0 0
    %290 = vmatmul.mubr.bf16.gmra.mrb[0].mxu0 %v205
    %v291 = vpop.f32.mrb[0].mxu0
    %v292 = vadd.f32 0.0, %v291
    %v293 = vpop.f32.mrb[0].mxu0
    %v294 = vpop.f32.mrb[0].mxu0
    %v295 = vadd.f32 0.0, %v294
    %v296 = vpop.f32.mrb[0].mxu0
    %297 = vmatprep.mubr.bf16.mxu0 0
    %298 = vmatmul.mubr.bf16.gmra.mrb[0].mxu0 %v206
    %v299 = vpop.f32.mrb[0].mxu0
    %v300 = vadd.f32 0.0, %v299
    %v301 = vpop.f32.mrb[0].mxu0
    %v302 = vpop.f32.mrb[0].mxu0
    %v303 = vadd.f32 0.0, %v302
    %v304 = vpop.f32.mrb[0].mxu0
    %305 = vmatprep.mubr.bf16.mxu0 0
    %306 = vmatmul.mubr.bf16.gmra.mrb[0].mxu0 %v207
    %v307 = vpop.f32.mrb[0].mxu0
    %v308 = vadd.f32 0.0, %v307
    %v309 = vpop.f32.mrb[0].mxu0
    %v310 = vpop.f32.mrb[0].mxu0
    %v311 = vadd.f32 0.0, %v310
    %v312 = vpop.f32.mrb[0].mxu0
    %313 = vmatprep.mubr.bf16.mxu0 0
    %314 = vmatmul.mubr.bf16.gmra.mrb[0].mxu0 %v208
    %v315 = vpop.f32.mrb[0].mxu0
    %v316 = vadd.f32 0.0, %v315
    %v317 = vpop.f32.mrb[0].mxu0
    %v318 = vpop.f32.mrb[0].mxu0
    %v319 = vadd.f32 0.0, %v318
    %v320 = vpop.f32.mrb[0].mxu0
    %321 = vdwg.mxu0
    %v322 = vpack.c.bf16 %v295, %v292
    %v323 = vpack.c.bf16 %v303, %v300
    %v324 = vpack.c.bf16 %v311, %v308
    %v325 = vpack.c.bf16 %v319, %v316
    %v327 = vsel %vm111, %v160, 0
    %v330 = vsel %vm111, %v161, 0
    %v333 = vsel %vm111, %v162, 0
    %v336 = vsel %vm111, %v163, 0
    %338 = vmatprep.subr.bf16.mxu0 0
    %339 = vmatpush1.bf16.msra.mxu0 %v322
    %340 = vmatprep.subr.bf16.mxu0 0
    %341 = vmatpush1.bf16.msra.mxu0 %v323
    %342 = vmatprep.subr.bf16.mxu0 0
    %343 = vmatpush1.bf16.msra.mxu0 %v324
    %344 = vmatprep.subr.bf16.mxu0 0
    %345 = vmatpush1.bf16.msra.mxu0 %v325
    %346 = vmatprep.subr.bf16.mxu0 0
    %347 = vmatpush1.bf16.msra.mxu0 0
    %348 = vmatprep.subr.bf16.mxu0 0
    %349 = vmatpush1.bf16.msra.mxu0 0
    %350 = vmatprep.subr.bf16.mxu0 0
    %351 = vmatpush1.bf16.msra.mxu0 0
    %352 = vmatprep.subr.bf16.mxu0 0
    %353 = vmatpush1.bf16.msra.mxu0 0
    %354 = vmatprep.subr.bf16.mxu0 0
    %355 = vmatpush1.bf16.msra.mxu0 0
    %356 = vmatprep.subr.bf16.mxu0 0
    %357 = vmatpush1.bf16.msra.mxu0 0
    %358 = vmatprep.subr.bf16.mxu0 0
    %359 = vmatpush1.bf16.msra.mxu0 0
    %360 = vmatprep.subr.bf16.mxu0 0
    %361 = vmatpush1.bf16.msra.mxu0 0
    %362 = vmatprep.subr.bf16.mxu0 0
    %363 = vmatpush1.bf16.msra.mxu0 0
    %364 = vmatprep.subr.bf16.mxu0 0
    %365 = vmatpush1.bf16.msra.mxu0 0
    %366 = vmatprep.subr.bf16.mxu0 0
    %367 = vmatpush1.bf16.msra.mxu0 0
    %368 = vmatprep.subr.bf16.mxu0 0
    %369 = vmatpush1.bf16.msra.mxu0 0
    %370 = vmatprep.mubr.bf16.mxu0 0
    %371 = vmatmul.mubr.bf16.gmra.mrb[0].mxu0 %v327
    %v372 = vpop.f32.mrb[0].mxu0
    %v373 = vadd.f32 0.0, %v372
    %v374 = vpop.f32.mrb[0].mxu0
    %v375 = vpop.f32.mrb[0].mxu0
    %v376 = vadd.f32 0.0, %v375
    %v377 = vpop.f32.mrb[0].mxu0
    %378 = vmatprep.mubr.bf16.mxu0 0
    %379 = vmatmul.mubr.bf16.gmra.mrb[0].mxu0 %v330
    %v380 = vpop.f32.mrb[0].mxu0
    %v381 = vadd.f32 0.0, %v380
    %v382 = vpop.f32.mrb[0].mxu0
    %v383 = vpop.f32.mrb[0].mxu0
    %v384 = vadd.f32 0.0, %v383
    %v385 = vpop.f32.mrb[0].mxu0
    %386 = vmatprep.mubr.bf16.mxu0 0
    %387 = vmatmul.mubr.bf16.gmra.mrb[0].mxu0 %v333
    %v388 = vpop.f32.mrb[0].mxu0
    %v389 = vadd.f32 0.0, %v388
    %v390 = vpop.f32.mrb[0].mxu0
    %v391 = vpop.f32.mrb[0].mxu0
    %v392 = vadd.f32 0.0, %v391
    %v393 = vpop.f32.mrb[0].mxu0
    %394 = vmatprep.mubr.bf16.mxu0 0
    %395 = vmatmul.mubr.bf16.gmra.mrb[0].mxu0 %v336
    %v396 = vpop.f32.mrb[0].mxu0
    %v397 = vadd.f32 0.0, %v396
    %v398 = vpop.f32.mrb[0].mxu0
    %v399 = vpop.f32.mrb[0].mxu0
    %v400 = vadd.f32 0.0, %v399
    %v401 = vpop.f32.mrb[0].mxu0
    %402 = vdwg.mxu0
    %v403 = vmul.f32 %v152, %v373
    %v404 = vmul.f32 %v153, %v376
    %v405 = vmul.f32 %v154, %v381
    %v406 = vmul.f32 %v155, %v384
    %v407 = vmul.f32 %v156, %v389
    %v408 = vmul.f32 %v157, %v392
    %v409 = vmul.f32 %v158, %v397
    %v410 = vmul.f32 %v159, %v400
    %v412 = vlaneseq
    %v413 = vshrl.u32 %v412, 7
    %v414 = vsub.s32 0, %v413
    %v415 = vrot.slane %v188, %v414
    %v417 = vadd.f32 %v403, %v415
    %v418 = vadd.f32 %v404, %v415
    %v419 = vadd.f32 %v405, %v415
    %v420 = vadd.f32 %v406, %v415
    %v421 = vadd.f32 %v407, %v415
    %v422 = vadd.f32 %v408, %v415
    %v423 = vadd.f32 %v409, %v415
    %v424 = vadd.f32 %v410, %v415
    %v425 = vmax.f32 %v417, 0.0
    %v426 = vmax.f32 %v418, 0.0
    %v427 = vmax.f32 %v419, 0.0
    %v428 = vmax.f32 %v420, 0.0
    %v429 = vmax.f32 %v421, 0.0
    %v430 = vmax.f32 %v422, 0.0
    %v431 = vmax.f32 %v423, 0.0
    %v432 = vmax.f32 %v424, 0.0
    %433 = vst [vmem:[#allocation11] sm:$0xff] %v425
    %434 = vst [vmem:[#allocation11 + $0x8] sm:$0xff] %v426
    %435 = vst [vmem:[#allocation11 + $0x10] sm:$0xff] %v427
    %436 = vst [vmem:[#allocation11 + $0x18] sm:$0xff] %v428
    %437 = vst [vmem:[#allocation11 + $0x20] sm:$0xff] %v429
    %438 = vst [vmem:[#allocation11 + $0x28] sm:$0xff] %v430
    %439 = vst [vmem:[#allocation11 + $0x30] sm:$0xff] %v431
    %440 = vst [vmem:[#allocation11 + $0x38] sm:$0xff] %v432
    %v441 = vld [vmem:[#allocation8] sm:$0xf]
    %v442 = vld [vmem:[#allocation8 + $0x4] sm:$0xf]
    %v443 = vld [vmem:[#allocation8 + $0x8] sm:$0xf]
    %v444 = vld [vmem:[#allocation8 + $0xc] sm:$0xf]
    %v445 = vld [vmem:[#allocation8 + $0x10] sm:$0xf]
    %v446 = vld [vmem:[#allocation8 + $0x14] sm:$0xf]
    %v447 = vld [vmem:[#allocation8 + $0x18] sm:$0xf]
    %v448 = vld [vmem:[#allocation8 + $0x1c] sm:$0xf]
    %v449 = vld [vmem:[#allocation8 + $0x20] sm:$0xf]
    %v450 = vld [vmem:[#allocation8 + $0x24] sm:$0xf]
    %v451 = vld [vmem:[#allocation8 + $0x28] sm:$0xf]
    %v452 = vld [vmem:[#allocation8 + $0x2c] sm:$0xf]
    %v453 = vld [vmem:[#allocation8 + $0x30] sm:$0xf]
    %v454 = vld [vmem:[#allocation8 + $0x34] sm:$0xf]
    %v455 = vld [vmem:[#allocation8 + $0x38] sm:$0xf]
    %v456 = vld [vmem:[#allocation8 + $0x3c] sm:$0xf]
    %v457 = vld [vmem:[%s5] sm:$0x1]
    %v458 = vmul.f32 %v152, %v425
    %v459 = vmul.f32 %v153, %v426
    %v460 = vmul.f32 %v154, %v427
    %v461 = vmul.f32 %v155, %v428
    %v462 = vmul.f32 %v156, %v429
    %v463 = vmul.f32 %v157, %v430
    %v464 = vmul.f32 %v158, %v431
    %v465 = vmul.f32 %v159, %v432
    %v466 = vpack.c.bf16 %v459, %v458
    %v467 = vpack.c.bf16 %v461, %v460
    %v468 = vpack.c.bf16 %v463, %v462
    %v469 = vpack.c.bf16 %v465, %v464
    %v486 = vunpack.c.l.b16 %v441
    %v487 = vunpack.c.l.b16 %v442
    %v488 = vunpack.c.l.b16 %v443
    %v489 = vunpack.c.l.b16 %v444
    %v490 = vunpack.c.l.b16 %v445
    %v491 = vunpack.c.l.b16 %v446
    %v492 = vunpack.c.l.b16 %v447
    %v493 = vunpack.c.l.b16 %v448
    %v494 = vunpack.c.l.b16 %v449
    %v495 = vunpack.c.l.b16 %v450
    %v496 = vunpack.c.l.b16 %v451
    %v497 = vunpack.c.l.b16 %v452
    %v498 = vunpack.c.l.b16 %v453
    %v499 = vunpack.c.l.b16 %v454
    %v500 = vunpack.c.l.b16 %v455
    %v501 = vunpack.c.l.b16 %v456
    %v502 = vpack.c.b16 %v487, %v486
    %v503 = vpack.c.b16 %v489, %v488
    %v504 = vpack.c.b16 %v491, %v490
    %v505 = vpack.c.b16 %v493, %v492
    %v506 = vpack.c.b16 %v495, %v494
    %v507 = vpack.c.b16 %v497, %v496
    %v508 = vpack.c.b16 %v499, %v498
    %v509 = vpack.c.b16 %v501, %v500
    %518 = vmatprep.subr.bf16.mxu0 0
    %519 = vmatpush1.bf16.msra.mxu0 %v502
    %520 = vmatprep.subr.bf16.mxu0 0
    %521 = vmatpush1.bf16.msra.mxu0 %v503
    %522 = vmatprep.subr.bf16.mxu0 0
    %523 = vmatpush1.bf16.msra.mxu0 %v504
    %524 = vmatprep.subr.bf16.mxu0 0
    %525 = vmatpush1.bf16.msra.mxu0 %v505
    %526 = vmatprep.subr.bf16.mxu0 0
    %527 = vmatpush1.bf16.msra.mxu0 %v506
    %528 = vmatprep.subr.bf16.mxu0 0
    %529 = vmatpush1.bf16.msra.mxu0 %v507
    %530 = vmatprep.subr.bf16.mxu0 0
    %531 = vmatpush1.bf16.msra.mxu0 %v508
    %532 = vmatprep.subr.bf16.mxu0 0
    %533 = vmatpush1.bf16.msra.mxu0 %v509
    %534 = vmatprep.subr.bf16.mxu0 0
    %535 = vmatpush1.bf16.msra.mxu0 0
    %536 = vmatprep.subr.bf16.mxu0 0
    %537 = vmatpush1.bf16.msra.mxu0 0
    %538 = vmatprep.subr.bf16.mxu0 0
    %539 = vmatpush1.bf16.msra.mxu0 0
    %540 = vmatprep.subr.bf16.mxu0 0
    %541 = vmatpush1.bf16.msra.mxu0 0
    %542 = vmatprep.subr.bf16.mxu0 0
    %543 = vmatpush1.bf16.msra.mxu0 0
    %544 = vmatprep.subr.bf16.mxu0 0
    %545 = vmatpush1.bf16.msra.mxu0 0
    %546 = vmatprep.subr.bf16.mxu0 0
    %547 = vmatpush1.bf16.msra.mxu0 0
    %548 = vmatprep.subr.bf16.mxu0 0
    %549 = vmatpush1.bf16.msra.mxu0 0
    %550 = vmatprep.mubr.bf16.mxu0 0
    %551 = vmatmul.mubr.bf16.gmra.mrb[0].mxu0 %v466
    %v552 = vpop.f32.mrb[0].mxu0
    %v553 = vadd.f32 0.0, %v552
    %v554 = vpop.f32.mrb[0].mxu0
    %v555 = vpop.f32.mrb[0].mxu0
    %v556 = vadd.f32 0.0, %v555
    %v557 = vpop.f32.mrb[0].mxu0
    %558 = vmatprep.mubr.bf16.mxu0 0
    %559 = vmatmul.mubr.bf16.gmra.mrb[0].mxu0 %v467
    %v560 = vpop.f32.mrb[0].mxu0
    %v561 = vadd.f32 0.0, %v560
    %v562 = vpop.f32.mrb[0].mxu0
    %v563 = vpop.f32.mrb[0].mxu0
    %v564 = vadd.f32 0.0, %v563
    %v565 = vpop.f32.mrb[0].mxu0
    %566 = vmatprep.mubr.bf16.mxu0 0
    %567 = vmatmul.mubr.bf16.gmra.mrb[0].mxu0 %v468
    %v568 = vpop.f32.mrb[0].mxu0
    %v569 = vadd.f32 0.0, %v568
    %v570 = vpop.f32.mrb[0].mxu0
    %v571 = vpop.f32.mrb[0].mxu0
    %v572 = vadd.f32 0.0, %v571
    %v573 = vpop.f32.mrb[0].mxu0
    %574 = vmatprep.mubr.bf16.mxu0 0
    %575 = vmatmul.mubr.bf16.gmra.mrb[0].mxu0 %v469
    %v576 = vpop.f32.mrb[0].mxu0
    %v577 = vadd.f32 0.0, %v576
    %v578 = vpop.f32.mrb[0].mxu0
    %v579 = vpop.f32.mrb[0].mxu0
    %v580 = vadd.f32 0.0, %v579
    %v581 = vpop.f32.mrb[0].mxu0
    %582 = vdwg.mxu0
    %v583 = vpack.c.bf16 %v556, %v553
    %v584 = vpack.c.bf16 %v564, %v561
    %v585 = vpack.c.bf16 %v572, %v569
    %v586 = vpack.c.bf16 %v580, %v577
    %587 = vmatprep.subr.bf16.mxu0 0
    %588 = vmatpush1.bf16.msra.mxu0 %v583
    %589 = vmatprep.subr.bf16.mxu0 0
    %590 = vmatpush1.bf16.msra.mxu0 %v584
    %591 = vmatprep.subr.bf16.mxu0 0
    %592 = vmatpush1.bf16.msra.mxu0 %v585
    %593 = vmatprep.subr.bf16.mxu0 0
    %594 = vmatpush1.bf16.msra.mxu0 %v586
    %595 = vmatprep.subr.bf16.mxu0 0
    %596 = vmatpush1.bf16.msra.mxu0 0
    %597 = vmatprep.subr.bf16.mxu0 0
    %598 = vmatpush1.bf16.msra.mxu0 0
    %599 = vmatprep.subr.bf16.mxu0 0
    %600 = vmatpush1.bf16.msra.mxu0 0
    %601 = vmatprep.subr.bf16.mxu0 0
    %602 = vmatpush1.bf16.msra.mxu0 0
    %603 = vmatprep.subr.bf16.mxu0 0
    %604 = vmatpush1.bf16.msra.mxu0 0
    %605 = vmatprep.subr.bf16.mxu0 0
    %606 = vmatpush1.bf16.msra.mxu0 0
    %607 = vmatprep.subr.bf16.mxu0 0
    %608 = vmatpush1.bf16.msra.mxu0 0
    %609 = vmatprep.subr.bf16.mxu0 0
    %610 = vmatpush1.bf16.msra.mxu0 0
    %611 = vmatprep.subr.bf16.mxu0 0
    %612 = vmatpush1.bf16.msra.mxu0 0
    %613 = vmatprep.subr.bf16.mxu0 0
    %614 = vmatpush1.bf16.msra.mxu0 0
    %615 = vmatprep.subr.bf16.mxu0 0
    %616 = vmatpush1.bf16.msra.mxu0 0
    %617 = vmatprep.subr.bf16.mxu0 0
    %618 = vmatpush1.bf16.msra.mxu0 0
    %619 = vmatprep.mubr.bf16.mxu0 0
    %620 = vmatmul.mubr.bf16.gmra.mrb[0].mxu0 %v327
    %v621 = vpop.f32.mrb[0].mxu0
    %v622 = vadd.f32 0.0, %v621
    %v623 = vpop.f32.mrb[0].mxu0
    %v624 = vpop.f32.mrb[0].mxu0
    %v625 = vadd.f32 0.0, %v624
    %v626 = vpop.f32.mrb[0].mxu0
    %627 = vmatprep.mubr.bf16.mxu0 0
    %628 = vmatmul.mubr.bf16.gmra.mrb[0].mxu0 %v330
    %v629 = vpop.f32.mrb[0].mxu0
    %v630 = vadd.f32 0.0, %v629
    %v631 = vpop.f32.mrb[0].mxu0
    %v632 = vpop.f32.mrb[0].mxu0
    %v633 = vadd.f32 0.0, %v632
    %v634 = vpop.f32.mrb[0].mxu0
    %635 = vmatprep.mubr.bf16.mxu0 0
    %636 = vmatmul.mubr.bf16.gmra.mrb[0].mxu0 %v333
    %v637 = vpop.f32.mrb[0].mxu0
    %v638 = vadd.f32 0.0, %v637
    %v639 = vpop.f32.mrb[0].mxu0
    %v640 = vpop.f32.mrb[0].mxu0
    %v641 = vadd.f32 0.0, %v640
    %v642 = vpop.f32.mrb[0].mxu0
    %643 = vmatprep.mubr.bf16.mxu0 0
    %644 = vmatmul.mubr.bf16.gmra.mrb[0].mxu0 %v336
    %v645 = vpop.f32.mrb[0].mxu0
    %v646 = vadd.f32 0.0, %v645
    %v647 = vpop.f32.mrb[0].mxu0
    %v648 = vpop.f32.mrb[0].mxu0
    %v649 = vadd.f32 0.0, %v648
    %v650 = vpop.f32.mrb[0].mxu0
    %651 = vdwg.mxu0
    %v652 = vmul.f32 %v152, %v622
    %v653 = vmul.f32 %v153, %v625
    %v654 = vmul.f32 %v154, %v630
    %v655 = vmul.f32 %v155, %v633
    %v656 = vmul.f32 %v156, %v638
    %v657 = vmul.f32 %v157, %v641
    %v658 = vmul.f32 %v158, %v646
    %v659 = vmul.f32 %v159, %v649
    %v661 = vlaneseq
    %v662 = vshrl.u32 %v661, 7
    %v663 = vsub.s32 0, %v662
    %v664 = vrot.slane %v457, %v663
    %v666 = vadd.f32 %v652, %v664
    %v667 = vadd.f32 %v653, %v664
    %v668 = vadd.f32 %v654, %v664
    %v669 = vadd.f32 %v655, %v664
    %v670 = vadd.f32 %v656, %v664
    %v671 = vadd.f32 %v657, %v664
    %v672 = vadd.f32 %v658, %v664
    %v673 = vadd.f32 %v659, %v664
    %v674 = vmax.f32 %v666, 0.0
    %v675 = vmax.f32 %v667, 0.0
    %v676 = vmax.f32 %v668, 0.0
    %v677 = vmax.f32 %v669, 0.0
    %v678 = vmax.f32 %v670, 0.0
    %v679 = vmax.f32 %v671, 0.0
    %v680 = vmax.f32 %v672, 0.0
    %v681 = vmax.f32 %v673, 0.0
    %682 = vst [vmem:[#allocation12] sm:$0xff] %v674
    %683 = vst [vmem:[#allocation12 + $0x8] sm:$0xff] %v675
    %684 = vst [vmem:[#allocation12 + $0x10] sm:$0xff] %v676
    %685 = vst [vmem:[#allocation12 + $0x18] sm:$0xff] %v677
    %686 = vst [vmem:[#allocation12 + $0x20] sm:$0xff] %v678
    %687 = vst [vmem:[#allocation12 + $0x28] sm:$0xff] %v679
    %688 = vst [vmem:[#allocation12 + $0x30] sm:$0xff] %v680
    %689 = vst [vmem:[#allocation12 + $0x38] sm:$0xff] %v681
    %v690 = vld [vmem:[#allocation10] sm:$0xf]
    %v691 = vld [vmem:[#allocation10 + $0x4] sm:$0xf]
    %v692 = vld [vmem:[#allocation10 + $0x8] sm:$0xf]
    %v693 = vld [vmem:[#allocation10 + $0xc] sm:$0xf]
    %v694 = vld [vmem:[#allocation10 + $0x10] sm:$0xf]
    %v695 = vld [vmem:[#allocation10 + $0x14] sm:$0xf]
    %v696 = vld [vmem:[#allocation10 + $0x18] sm:$0xf]
    %v697 = vld [vmem:[#allocation10 + $0x1c] sm:$0xf]
    %v698 = vld [vmem:[#allocation10 + $0x20] sm:$0xf]
    %v699 = vld [vmem:[#allocation10 + $0x24] sm:$0xf]
    %v700 = vld [vmem:[#allocation10 + $0x28] sm:$0xf]
    %v701 = vld [vmem:[#allocation10 + $0x2c] sm:$0xf]
    %v702 = vld [vmem:[#allocation10 + $0x30] sm:$0xf]
    %v703 = vld [vmem:[#allocation10 + $0x34] sm:$0xf]
    %v704 = vld [vmem:[#allocation10 + $0x38] sm:$0xf]
    %v705 = vld [vmem:[#allocation10 + $0x3c] sm:$0xf]
    %v706 = vld [vmem:[%s7] sm:$0x1]
    %v707 = vmul.f32 %v152, %v674
    %v708 = vmul.f32 %v153, %v675
    %v709 = vmul.f32 %v154, %v676
    %v710 = vmul.f32 %v155, %v677
    %v711 = vmul.f32 %v156, %v678
    %v712 = vmul.f32 %v157, %v679
    %v713 = vmul.f32 %v158, %v680
    %v714 = vmul.f32 %v159, %v681
    %v715 = vpack.c.bf16 %v708, %v707
    %v716 = vpack.c.bf16 %v710, %v709
    %v717 = vpack.c.bf16 %v712, %v711
    %v718 = vpack.c.bf16 %v714, %v713
    %v735 = vunpack.c.l.b16 %v690
    %v736 = vunpack.c.l.b16 %v691
    %v737 = vunpack.c.l.b16 %v692
    %v738 = vunpack.c.l.b16 %v693
    %v739 = vunpack.c.l.b16 %v694
    %v740 = vunpack.c.l.b16 %v695
    %v741 = vunpack.c.l.b16 %v696
    %v742 = vunpack.c.l.b16 %v697
    %v743 = vunpack.c.l.b16 %v698
    %v744 = vunpack.c.l.b16 %v699
    %v745 = vunpack.c.l.b16 %v700
    %v746 = vunpack.c.l.b16 %v701
    %v747 = vunpack.c.l.b16 %v702
    %v748 = vunpack.c.l.b16 %v703
    %v749 = vunpack.c.l.b16 %v704
    %v750 = vunpack.c.l.b16 %v705
    %v751 = vpack.c.b16 %v736, %v735
    %v752 = vpack.c.b16 %v738, %v737
    %v753 = vpack.c.b16 %v740, %v739
    %v754 = vpack.c.b16 %v742, %v741
    %v755 = vpack.c.b16 %v744, %v743
    %v756 = vpack.c.b16 %v746, %v745
    %v757 = vpack.c.b16 %v748, %v747
    %v758 = vpack.c.b16 %v750, %v749
    %767 = vmatprep.subr.bf16.mxu0 0
    %768 = vmatpush1.bf16.msra.mxu0 %v751
    %769 = vmatprep.subr.bf16.mxu0 0
    %770 = vmatpush1.bf16.msra.mxu0 %v752
    %771 = vmatprep.subr.bf16.mxu0 0
    %772 = vmatpush1.bf16.msra.mxu0 %v753
    %773 = vmatprep.subr.bf16.mxu0 0
    %774 = vmatpush1.bf16.msra.mxu0 %v754
    %775 = vmatprep.subr.bf16.mxu0 0
    %776 = vmatpush1.bf16.msra.mxu0 %v755
    %777 = vmatprep.subr.bf16.mxu0 0
    %778 = vmatpush1.bf16.msra.mxu0 %v756
    %779 = vmatprep.subr.bf16.mxu0 0
    %780 = vmatpush1.bf16.msra.mxu0 %v757
    %781 = vmatprep.subr.bf16.mxu0 0
    %782 = vmatpush1.bf16.msra.mxu0 %v758
    %783 = vmatprep.subr.bf16.mxu0 0
    %784 = vmatpush1.bf16.msra.mxu0 0
    %785 = vmatprep.subr.bf16.mxu0 0
    %786 = vmatpush1.bf16.msra.mxu0 0
    %787 = vmatprep.subr.bf16.mxu0 0
    %788 = vmatpush1.bf16.msra.mxu0 0
    %789 = vmatprep.subr.bf16.mxu0 0
    %790 = vmatpush1.bf16.msra.mxu0 0
    %791 = vmatprep.subr.bf16.mxu0 0
    %792 = vmatpush1.bf16.msra.mxu0 0
    %793 = vmatprep.subr.bf16.mxu0 0
    %794 = vmatpush1.bf16.msra.mxu0 0
    %795 = vmatprep.subr.bf16.mxu0 0
    %796 = vmatpush1.bf16.msra.mxu0 0
    %797 = vmatprep.subr.bf16.mxu0 0
    %798 = vmatpush1.bf16.msra.mxu0 0
    %799 = vmatprep.mubr.bf16.mxu0 0
    %800 = vmatmul.mubr.bf16.gmra.mrb[0].mxu0 %v715
    %v801 = vpop.f32.mrb[0].mxu0
    %v802 = vadd.f32 0.0, %v801
    %v803 = vpop.f32.mrb[0].mxu0
    %v804 = vpop.f32.mrb[0].mxu0
    %v805 = vadd.f32 0.0, %v804
    %v806 = vpop.f32.mrb[0].mxu0
    %807 = vmatprep.mubr.bf16.mxu0 0
    %808 = vmatmul.mubr.bf16.gmra.mrb[0].mxu0 %v716
    %v809 = vpop.f32.mrb[0].mxu0
    %v810 = vadd.f32 0.0, %v809
    %v811 = vpop.f32.mrb[0].mxu0
    %v812 = vpop.f32.mrb[0].mxu0
    %v813 = vadd.f32 0.0, %v812
    %v814 = vpop.f32.mrb[0].mxu0
    %815 = vmatprep.mubr.bf16.mxu0 0
    %816 = vmatmul.mubr.bf16.gmra.mrb[0].mxu0 %v717
    %v817 = vpop.f32.mrb[0].mxu0
    %v818 = vadd.f32 0.0, %v817
    %v819 = vpop.f32.mrb[0].mxu0
    %v820 = vpop.f32.mrb[0].mxu0
    %v821 = vadd.f32 0.0, %v820
    %v822 = vpop.f32.mrb[0].mxu0
    %823 = vmatprep.mubr.bf16.mxu0 0
    %824 = vmatmul.mubr.bf16.gmra.mrb[0].mxu0 %v718
    %v825 = vpop.f32.mrb[0].mxu0
    %v826 = vadd.f32 0.0, %v825
    %v827 = vpop.f32.mrb[0].mxu0
    %v828 = vpop.f32.mrb[0].mxu0
    %v829 = vadd.f32 0.0, %v828
    %v830 = vpop.f32.mrb[0].mxu0
    %831 = vdwg.mxu0
    %v832 = vpack.c.bf16 %v805, %v802
    %v833 = vpack.c.bf16 %v813, %v810
    %v834 = vpack.c.bf16 %v821, %v818
    %v835 = vpack.c.bf16 %v829, %v826
    %836 = vmatprep.subr.bf16.mxu0 0
    %837 = vmatpush1.bf16.msra.mxu0 %v832
    %838 = vmatprep.subr.bf16.mxu0 0
    %839 = vmatpush1.bf16.msra.mxu0 %v833
    %840 = vmatprep.subr.bf16.mxu0 0
    %841 = vmatpush1.bf16.msra.mxu0 %v834
    %842 = vmatprep.subr.bf16.mxu0 0
    %843 = vmatpush1.bf16.msra.mxu0 %v835
    %844 = vmatprep.subr.bf16.mxu0 0
    %845 = vmatpush1.bf16.msra.mxu0 0
    %846 = vmatprep.subr.bf16.mxu0 0
    %847 = vmatpush1.bf16.msra.mxu0 0
    %848 = vmatprep.subr.bf16.mxu0 0
    %849 = vmatpush1.bf16.msra.mxu0 0
    %850 = vmatprep.subr.bf16.mxu0 0
    %851 = vmatpush1.bf16.msra.mxu0 0
    %852 = vmatprep.subr.bf16.mxu0 0
    %853 = vmatpush1.bf16.msra.mxu0 0
    %854 = vmatprep.subr.bf16.mxu0 0
    %855 = vmatpush1.bf16.msra.mxu0 0
    %856 = vmatprep.subr.bf16.mxu0 0
    %857 = vmatpush1.bf16.msra.mxu0 0
    %858 = vmatprep.subr.bf16.mxu0 0
    %859 = vmatpush1.bf16.msra.mxu0 0
    %860 = vmatprep.subr.bf16.mxu0 0
    %861 = vmatpush1.bf16.msra.mxu0 0
    %862 = vmatprep.subr.bf16.mxu0 0
    %863 = vmatpush1.bf16.msra.mxu0 0
    %864 = vmatprep.subr.bf16.mxu0 0
    %865 = vmatpush1.bf16.msra.mxu0 0
    %866 = vmatprep.subr.bf16.mxu0 0
    %867 = vmatpush1.bf16.msra.mxu0 0
    %868 = vmatprep.mubr.bf16.mxu0 0
    %869 = vmatmul.mubr.bf16.gmra.mrb[0].mxu0 %v327
    %v870 = vpop.f32.mrb[0].mxu0
    %v871 = vadd.f32 0.0, %v870
    %v872 = vpop.f32.mrb[0].mxu0
    %v873 = vpop.f32.mrb[0].mxu0
    %v874 = vadd.f32 0.0, %v873
    %v875 = vpop.f32.mrb[0].mxu0
    %876 = vmatprep.mubr.bf16.mxu0 0
    %877 = vmatmul.mubr.bf16.gmra.mrb[0].mxu0 %v330
    %v878 = vpop.f32.mrb[0].mxu0
    %v879 = vadd.f32 0.0, %v878
    %v880 = vpop.f32.mrb[0].mxu0
    %v881 = vpop.f32.mrb[0].mxu0
    %v882 = vadd.f32 0.0, %v881
    %v883 = vpop.f32.mrb[0].mxu0
    %884 = vmatprep.mubr.bf16.mxu0 0
    %885 = vmatmul.mubr.bf16.gmra.mrb[0].mxu0 %v333
    %v886 = vpop.f32.mrb[0].mxu0
    %v887 = vadd.f32 0.0, %v886
    %v888 = vpop.f32.mrb[0].mxu0
    %v889 = vpop.f32.mrb[0].mxu0
    %v890 = vadd.f32 0.0, %v889
    %v891 = vpop.f32.mrb[0].mxu0
    %892 = vmatprep.mubr.bf16.mxu0 0
    %893 = vmatmul.mubr.bf16.gmra.mrb[0].mxu0 %v336
    %v894 = vpop.f32.mrb[0].mxu0
    %v895 = vadd.f32 0.0, %v894
    %v896 = vpop.f32.mrb[0].mxu0
    %v897 = vpop.f32.mrb[0].mxu0
    %v898 = vadd.f32 0.0, %v897
    %v899 = vpop.f32.mrb[0].mxu0
    %900 = vdwg.mxu0
    %v901 = vmul.f32 %v152, %v871
    %v902 = vmul.f32 %v153, %v874
    %v903 = vmul.f32 %v154, %v879
    %v904 = vmul.f32 %v155, %v882
    %v905 = vmul.f32 %v156, %v887
    %v906 = vmul.f32 %v157, %v890
    %v907 = vmul.f32 %v158, %v895
    %v908 = vmul.f32 %v159, %v898
    %v910 = vlaneseq
    %v911 = vshrl.u32 %v910, 7
    %v912 = vsub.s32 0, %v911
    %v913 = vrot.slane %v706, %v912
    %v915 = vadd.f32 %v901, %v913
    %v916 = vadd.f32 %v902, %v913
    %v917 = vadd.f32 %v903, %v913
    %v918 = vadd.f32 %v904, %v913
    %v919 = vadd.f32 %v905, %v913
    %v920 = vadd.f32 %v906, %v913
    %v921 = vadd.f32 %v907, %v913
    %v922 = vadd.f32 %v908, %v913
    %v923 = vmax.f32 %v915, 0.0
    %v924 = vmax.f32 %v916, 0.0
    %v925 = vmax.f32 %v917, 0.0
    %v926 = vmax.f32 %v918, 0.0
    %v927 = vmax.f32 %v919, 0.0
    %v928 = vmax.f32 %v920, 0.0
    %v929 = vmax.f32 %v921, 0.0
    %v930 = vmax.f32 %v922, 0.0
    %931 = vst [vmem:[#allocation14] sm:$0xff] %v923
    %932 = vst [vmem:[#allocation14 + $0x8] sm:$0xff] %v924
    %933 = vst [vmem:[#allocation14 + $0x10] sm:$0xff] %v925
    %934 = vst [vmem:[#allocation14 + $0x18] sm:$0xff] %v926
    %935 = vst [vmem:[#allocation14 + $0x20] sm:$0xff] %v927
    %936 = vst [vmem:[#allocation14 + $0x28] sm:$0xff] %v928
    %937 = vst [vmem:[#allocation14 + $0x30] sm:$0xff] %v929
    %938 = vst [vmem:[#allocation14 + $0x38] sm:$0xff] %v930
    // Predicated region
    $region54: #{tpu_custom_call.1} parent=1 // pred_check
      _
    $region55: #{tpu_custom_call.1} parent=1 // pred_check_branch
      %940 = sbr.rel (0) target = $region57
    $region56: #{tpu_custom_call.1} parent=1 // pred_region
      %s942 = ssub.s32 1024, 1024
      %943 = vsyncadd [#allocation4], %s942
      %s944 = sshll.u32 [#allocation11], 4
      %s945 = int_to_ptr.vmem [resolvable:$true] %s944
      %950 = dma.vmem_to_hbm [thread:$0]  %s945, 1024, %s8, [#allocation4], 128, 128, 8
    $region57: #{tpu_custom_call.1} parent=1 // pred_fallthru
      _
    // Predicated region
    $region58: #{tpu_custom_call.1} parent=1 // pred_check
      _
    $region59: #{tpu_custom_call.1} parent=1 // pred_check_branch
      %952 = sbr.rel (0) target = $region61
    $region60: #{tpu_custom_call.1} parent=1 // pred_region
      %s954 = ssub.s32 1024, 1024
      %955 = vsyncadd [#allocation13], %s954
      %s956 = sshll.u32 [#allocation12], 4
      %s957 = int_to_ptr.vmem [resolvable:$true] %s956
      %962 = dma.vmem_to_hbm [thread:$0]  %s957, 1024, %s9, [#allocation13], 128, 128, 8
    $region61: #{tpu_custom_call.1} parent=1 // pred_fallthru
      _
    // Predicated region
    $region62: #{tpu_custom_call.1} parent=1 // pred_check
      _
    $region63: #{tpu_custom_call.1} parent=1 // pred_check_branch
      %964 = sbr.rel (0) target = $region65
    $region64: #{tpu_custom_call.1} parent=1 // pred_region
      %s966 = ssub.s32 1024, 1024
      %967 = vsyncadd [#allocation13], %s966
      %s968 = sshll.u32 [#allocation14], 4
      %s969 = int_to_ptr.vmem [resolvable:$true] %s968
      %974 = dma.vmem_to_hbm [thread:$0]  %s969, 1024, %s10, [#allocation13], 128, 128, 8
    $region65: #{tpu_custom_call.1} parent=1 // pred_fallthru
      _
    // Predicated region
    $region66: #{tpu_custom_call.1} parent=1 // pred_check
      _
    $region67: #{tpu_custom_call.1} parent=1 // pred_check_branch
      %976 = sbr.rel (0) target = $region69
    $region68: #{tpu_custom_call.1} parent=1 // pred_region
      %977 = dma.done [#allocation4], 1024
    $region69: #{tpu_custom_call.1} parent=1 // pred_fallthru
      _
    // Predicated region
    $region70: #{tpu_custom_call.1} parent=1 // pred_check
      _
    $region71: #{tpu_custom_call.1} parent=1 // pred_check_branch
      %979 = sbr.rel (0) target = $region73
    $region72: #{tpu_custom_call.1} parent=1 // pred_region
      %980 = dma.done [#allocation13], 1024
    $region73: #{tpu_custom_call.1} parent=1 // pred_fallthru
      _
    // Predicated region
    $region74: #{tpu_custom_call.1} parent=1 // pred_check
      _
    $region75: #{tpu_custom_call.1} parent=1 // pred_check_branch
      %982 = sbr.rel (0) target = $region77
    $region76: #{tpu_custom_call.1} parent=1 // pred_region
      %983 = dma.done [#allocation13], 1024
    $region77: #{tpu_custom_call.1} parent=1 // pred_fallthru
      _
    %984 = vsyncpa [#allocation3], 1
    %985 = vsyncpa [#allocation6], 1
    %986 = vsyncpa [#allocation9], 1
    %987 = vsyncpa [#allocation4], 1
    %988 = vsyncpa [#allocation13], 1

</llo_original>
